<compile_context>
chip_gen: v5e
topology: v5e:2x2
jax: 0.10.0
libtpu: 0.0.40
codegen_flags: <defaults>
</compile_context>

<pallas_src>
import functools

import jax
import jax.numpy as jnp
from jax.experimental import pallas as pl
from jax.experimental.pallas import tpu as pltpu


def _kd_logit_stand_kernel(scale_ref, ys_ref, yt_ref, out_ref, *, total_rows):
    inv_t = scale_ref[0, 0]                       # 1 / T (runtime SMEM scalar)
    ys = ys_ref[...].astype(jnp.float32)          # upcast per-tile, in vregs
    yt = yt_ref[...].astype(jnp.float32)
    tb, num_classes = ys.shape
    cf = jnp.float32(num_classes)

    def row_scale(x):
        # Fused moments: a single pass gives sum(x) and sum(x^2);
        # Bessel correction (C-1) to match torch.std's default.
        s1 = jnp.sum(x, axis=-1, keepdims=True)
        s2 = jnp.sum(x * x, axis=-1, keepdims=True)
        mean = s1 / cf
        var = jnp.maximum((s2 - cf * mean * mean) / (cf - 1.0), 0.0)
        # log_softmax is shift-invariant, so the per-row (x - mean) subtraction
        # is dropped entirely; only the 1/(T*(eps + std)) scale is needed.
        return inv_t / (1e-07 + jnp.sqrt(var))

    zs = ys * row_scale(ys)                       # == normalize(y_s)/T + per-row const
    zt = yt * row_scale(yt)

    # Student: log-softmax only.
    sh_s = zs - jnp.max(zs, axis=-1, keepdims=True)
    log_p_s = sh_s - jnp.log(jnp.sum(jnp.exp(sh_s), axis=-1, keepdims=True))

    # Teacher: reuse the exponentials for both softmax and log-softmax
    # (saves one full EUP exp pass per element vs. exp(log_softmax(.))).
    sh_t = zt - jnp.max(zt, axis=-1, keepdims=True)
    e_t = jnp.exp(sh_t)
    sum_t = jnp.sum(e_t, axis=-1, keepdims=True)
    log_p_t = sh_t - jnp.log(sum_t)
    # exact reciprocal (approx=True would exceed the loss tolerance).
    p_t = e_t * pl.reciprocal(sum_t, approx=False)

    # F.kl_div(log_p_s, p_t, reduction='sum') == sum(p_t * (log p_t - log p_s))
    row_kl = jnp.sum(p_t * (log_p_t - log_p_s), axis=-1, keepdims=True)  # (tb, 1)

    # Mask rows of a padded final batch tile (garbage rows -> 0 contribution).
    row_ids = (pl.program_id(0) * tb
               + jax.lax.broadcasted_iota(jnp.int32, row_kl.shape, 0))
    row_kl = jnp.where(row_ids < total_rows, row_kl, 0.0)

    # Per-block partial KL, broadcast into a lane-dense (1, 8, 128) slab so the
    # store is an aligned, unmasked vst; blocks are independent -> grid axis
    # can be "parallel" (both TCs on v7x).
    out_ref[...] = jnp.full(out_ref.shape, jnp.sum(row_kl), dtype=jnp.float32)

    # TODO(synk): class_weights branch (argmax gather + per-row weighting) not
    # implemented; forward is assumed to be called with class_weights=None.


def _row_tile(batch, num_classes, in_itemsize):
    """Pick a batch tile that stays well inside scoped VMEM on v5e/v6e/v7x."""
    # Rough per-row working set: 2 inputs x 2 pipeline buffers in the source
    # dtype + ~8 f32-sized temporaries in the kernel body.
    bytes_per_row = num_classes * (4 * in_itemsize + 8 * 4)
    budget = 8 * 1024 * 1024
    tb = int(budget // max(bytes_per_row, 1))
    tb = max(8, min(512, tb))
    tb = (tb // 8) * 8
    if batch <= tb:
        return batch          # one block covering the whole batch (full-dim block)
    return tb


def distill_kl_logit_stand(y_s, y_t, T):
    """Pallas implementation of DistillKL_logit_stand.forward(y_s, y_t)."""
    assert y_s.shape == y_t.shape and y_s.ndim == 2
    B, C = y_s.shape
    tb = _row_tile(B, C, jnp.dtype(y_s.dtype).itemsize)
    nb = pl.cdiv(B, tb)

    t_f32 = jnp.asarray(T, jnp.float32)
    inv_t = jnp.reshape(1.0 / t_f32, (1, 1))      # runtime SMEM scalar

    kernel = functools.partial(_kd_logit_stand_kernel, total_rows=B)
    partials = pl.pallas_call(
        kernel,
        grid=(nb,),
        in_specs=[
            pl.BlockSpec(memory_space=pltpu.MemorySpace.SMEM),   # 1/T scalar
            pl.BlockSpec((tb, C), lambda i: (i, 0)),             # student logits
            pl.BlockSpec((tb, C), lambda i: (i, 0)),             # teacher logits
        ],
        out_specs=pl.BlockSpec((1, 8, 128), lambda i: (i, 0, 0)),
        out_shape=jax.ShapeDtypeStruct((nb, 8, 128), jnp.float32),
        compiler_params=pltpu.CompilerParams(
            dimension_semantics=("parallel",),
        ),
    )(inv_t, y_s, y_t)

    # Tiny final reduction over per-block partials + the T^2 / batch scaling.
    return jnp.sum(partials[:, 0, 0]) * (t_f32 * t_f32) / B


def _reference(y_s, y_t, T):
    # Pure-JAX reference mirroring the PyTorch semantics (for sanity check).
    def normalize(x):
        mean = jnp.mean(x, axis=-1, keepdims=True)
        std = jnp.std(x, axis=-1, keepdims=True, ddof=1)
        return (x - mean) / (1e-07 + std)

    zs = normalize(y_s) / T
    zt = normalize(y_t) / T
    log_p_s = jax.nn.log_softmax(zs, axis=1)
    log_p_t = jax.nn.log_softmax(zt, axis=1)
    p_t = jnp.exp(log_p_t)
    kl = jnp.sum(p_t * (log_p_t - log_p_s))
    return kl * T ** 2 / y_s.shape[0]


if __name__ == "__main__":
    key = jax.random.PRNGKey(0)
    k1, k2 = jax.random.split(key)
    B, C = 8, 128          # batch=8, num_classes=128
    T = 4.0
    y_s = jax.random.normal(k1, (B, C), dtype=jnp.float32) * 3.0
    y_t = jax.random.normal(k2, (B, C), dtype=jnp.float32) * 3.0

    loss = distill_kl_logit_stand(y_s, y_t, T)
    loss = jax.block_until_ready(loss)

    ref = _reference(y_s, y_t, T)
    assert jnp.allclose(loss, ref, rtol=1e-4, atol=1e-5), (loss, ref)

    print("KERNEL_OK")
</pallas_src>

<mosaic_0001>
module attributes {stable_mosaic.version = 11 : i64} {
  func.func @_kd_logit_stand_kernel(%arg0: i32, %arg1: memref<1x1xf32, #tpu.memory_space<smem>>, %arg2: memref<8x128xf32, #tpu.memory_space<vmem>>, %arg3: memref<8x128xf32, #tpu.memory_space<vmem>>, %arg4: memref<1x8x128xf32, #tpu.memory_space<vmem>>) attributes {dimension_semantics = [#tpu.dimension_semantics<parallel>], iteration_bounds = array<i64: 1>, scalar_prefetch = 0 : i64, scratch_operands = 0 : i64, tpu.core_type = #tpu.core_type<tc>, window_params = [{transform_indices = @transform_0, window_bounds = array<i64: 1, 1>}, {transform_indices = @transform_1, window_bounds = array<i64: 8, 128>}, {transform_indices = @transform_2, window_bounds = array<i64: 8, 128>}, {transform_indices = @transform_3, window_bounds = array<i64: 1, 8, 128>}]} {
    %c0 = arith.constant 0 : index
    %c0_0 = arith.constant 0 : index
    %0 = memref.load %arg1[%c0, %c0_0] : memref<1x1xf32, #tpu.memory_space<smem>>
    %c0_1 = arith.constant 0 : index
    %c0_2 = arith.constant 0 : index
    %1 = vector.load %arg2[%c0_1, %c0_2] : memref<8x128xf32, #tpu.memory_space<vmem>>, vector<8x128xf32>
    %c0_3 = arith.constant 0 : index
    %c0_4 = arith.constant 0 : index
    %2 = vector.load %arg3[%c0_3, %c0_4] : memref<8x128xf32, #tpu.memory_space<vmem>>, vector<8x128xf32>
    %cst = arith.constant dense<0.000000e+00> : vector<8xf32>
    %3 = vector.multi_reduction <add>, %1, %cst [1] : vector<8x128xf32> to vector<8xf32>
    %4 = vector.shape_cast %3 : vector<8xf32> to vector<8x1xf32>
    %5 = arith.mulf %1, %1 : vector<8x128xf32>
    %cst_5 = arith.constant dense<0.000000e+00> : vector<8xf32>
    %6 = vector.multi_reduction <add>, %5, %cst_5 [1] : vector<8x128xf32> to vector<8xf32>
    %7 = vector.shape_cast %6 : vector<8xf32> to vector<8x1xf32>
    %cst_6 = arith.constant 1.280000e+02 : f32
    %8 = vector.broadcast %cst_6 : f32 to vector<8x1xf32>
    %9 = arith.divf %4, %8 : vector<8x1xf32>
    %cst_7 = arith.constant 1.280000e+02 : f32
    %10 = vector.broadcast %cst_7 : f32 to vector<8x1xf32>
    %11 = arith.mulf %10, %9 : vector<8x1xf32>
    %12 = arith.mulf %11, %9 : vector<8x1xf32>
    %13 = arith.subf %7, %12 : vector<8x1xf32>
    %cst_8 = arith.constant 1.280000e+02 : f32
    %cst_9 = arith.constant 1.000000e+00 : f32
    %14 = arith.subf %cst_8, %cst_9 : f32
    %15 = vector.broadcast %14 : f32 to vector<8x1xf32>
    %16 = arith.divf %13, %15 : vector<8x1xf32>
    %cst_10 = arith.constant 0.000000e+00 : f32
    %17 = vector.broadcast %cst_10 : f32 to vector<8x1xf32>
    %18 = arith.maximumf %16, %17 : vector<8x1xf32>
    %19 = math.sqrt %18 : vector<8x1xf32>
    %cst_11 = arith.constant 1.000000e-07 : f32
    %20 = vector.broadcast %cst_11 : f32 to vector<8x1xf32>
    %21 = arith.addf %20, %19 : vector<8x1xf32>
    %22 = vector.broadcast %0 : f32 to vector<8x1xf32>
    %23 = arith.divf %22, %21 : vector<8x1xf32>
    %24 = vector.broadcast %23 : vector<8x1xf32> to vector<8x128xf32>
    %25 = arith.mulf %1, %24 : vector<8x128xf32>
    %cst_12 = arith.constant dense<0.000000e+00> : vector<8xf32>
    %26 = vector.multi_reduction <add>, %2, %cst_12 [1] : vector<8x128xf32> to vector<8xf32>
    %27 = vector.shape_cast %26 : vector<8xf32> to vector<8x1xf32>
    %28 = arith.mulf %2, %2 : vector<8x128xf32>
    %cst_13 = arith.constant dense<0.000000e+00> : vector<8xf32>
    %29 = vector.multi_reduction <add>, %28, %cst_13 [1] : vector<8x128xf32> to vector<8xf32>
    %30 = vector.shape_cast %29 : vector<8xf32> to vector<8x1xf32>
    %cst_14 = arith.constant 1.280000e+02 : f32
    %31 = vector.broadcast %cst_14 : f32 to vector<8x1xf32>
    %32 = arith.divf %27, %31 : vector<8x1xf32>
    %cst_15 = arith.constant 1.280000e+02 : f32
    %33 = vector.broadcast %cst_15 : f32 to vector<8x1xf32>
    %34 = arith.mulf %33, %32 : vector<8x1xf32>
    %35 = arith.mulf %34, %32 : vector<8x1xf32>
    %36 = arith.subf %30, %35 : vector<8x1xf32>
    %cst_16 = arith.constant 1.280000e+02 : f32
    %cst_17 = arith.constant 1.000000e+00 : f32
    %37 = arith.subf %cst_16, %cst_17 : f32
    %38 = vector.broadcast %37 : f32 to vector<8x1xf32>
    %39 = arith.divf %36, %38 : vector<8x1xf32>
    %cst_18 = arith.constant 0.000000e+00 : f32
    %40 = vector.broadcast %cst_18 : f32 to vector<8x1xf32>
    %41 = arith.maximumf %39, %40 : vector<8x1xf32>
    %42 = math.sqrt %41 : vector<8x1xf32>
    %cst_19 = arith.constant 1.000000e-07 : f32
    %43 = vector.broadcast %cst_19 : f32 to vector<8x1xf32>
    %44 = arith.addf %43, %42 : vector<8x1xf32>
    %45 = vector.broadcast %0 : f32 to vector<8x1xf32>
    %46 = arith.divf %45, %44 : vector<8x1xf32>
    %47 = vector.broadcast %46 : vector<8x1xf32> to vector<8x128xf32>
    %48 = arith.mulf %2, %47 : vector<8x128xf32>
    %cst_20 = arith.constant dense<0xFF800000> : vector<8xf32>
    %49 = vector.multi_reduction <maximumf>, %25, %cst_20 [1] : vector<8x128xf32> to vector<8xf32>
    %50 = vector.shape_cast %49 : vector<8xf32> to vector<8x1xf32>
    %51 = vector.broadcast %50 : vector<8x1xf32> to vector<8x128xf32>
    %52 = arith.subf %25, %51 : vector<8x128xf32>
    %53 = math.exp %52 : vector<8x128xf32>
    %cst_21 = arith.constant dense<0.000000e+00> : vector<8xf32>
    %54 = vector.multi_reduction <add>, %53, %cst_21 [1] : vector<8x128xf32> to vector<8xf32>
    %55 = vector.shape_cast %54 : vector<8xf32> to vector<8x1xf32>
    %56 = math.log %55 : vector<8x1xf32>
    %57 = vector.broadcast %56 : vector<8x1xf32> to vector<8x128xf32>
    %58 = arith.subf %52, %57 : vector<8x128xf32>
    %cst_22 = arith.constant dense<0xFF800000> : vector<8xf32>
    %59 = vector.multi_reduction <maximumf>, %48, %cst_22 [1] : vector<8x128xf32> to vector<8xf32>
    %60 = vector.shape_cast %59 : vector<8xf32> to vector<8x1xf32>
    %61 = vector.broadcast %60 : vector<8x1xf32> to vector<8x128xf32>
    %62 = arith.subf %48, %61 : vector<8x128xf32>
    %63 = math.exp %62 : vector<8x128xf32>
    %cst_23 = arith.constant dense<0.000000e+00> : vector<8xf32>
    %64 = vector.multi_reduction <add>, %63, %cst_23 [1] : vector<8x128xf32> to vector<8xf32>
    %65 = vector.shape_cast %64 : vector<8xf32> to vector<8x1xf32>
    %66 = math.log %65 : vector<8x1xf32>
    %67 = vector.broadcast %66 : vector<8x1xf32> to vector<8x128xf32>
    %68 = arith.subf %62, %67 : vector<8x128xf32>
    %69 = tpu.reciprocal %65 : vector<8x1xf32> -> vector<8x1xf32>
    %70 = vector.broadcast %69 : vector<8x1xf32> to vector<8x128xf32>
    %71 = arith.mulf %63, %70 : vector<8x128xf32>
    %72 = arith.subf %68, %58 : vector<8x128xf32>
    %73 = arith.mulf %71, %72 : vector<8x128xf32>
    %cst_24 = arith.constant dense<0.000000e+00> : vector<8xf32>
    %74 = vector.multi_reduction <add>, %73, %cst_24 [1] : vector<8x128xf32> to vector<8xf32>
    %75 = vector.shape_cast %74 : vector<8xf32> to vector<8x1xf32>
    %c8_i32 = arith.constant 8 : i32
    %76 = arith.muli %arg0, %c8_i32 : i32
    %77 = tpu.iota {dimensions = array<i32: 0>} : vector<8x1xi32>
    %78 = vector.broadcast %76 : i32 to vector<8x1xi32>
    %79 = arith.addi %78, %77 : vector<8x1xi32>
    %c8_i32_25 = arith.constant 8 : i32
    %80 = vector.broadcast %c8_i32_25 : i32 to vector<8x1xi32>
    %81 = arith.cmpi slt, %79, %80 : vector<8x1xi32>
    %cst_26 = arith.constant 0.000000e+00 : f32
    %82 = vector.broadcast %cst_26 : f32 to vector<8x1xf32>
    %83 = arith.select %81, %75, %82 : vector<8x1xi1>, vector<8x1xf32>
    %84 = vector.shape_cast %83 : vector<8x1xf32> to vector<1x8x1xf32>
    %cst_27 = arith.constant dense<0.000000e+00> : vector<1xf32>
    %85 = vector.multi_reduction <add>, %84, %cst_27 [1, 2] : vector<1x8x1xf32> to vector<1xf32>
    %86 = vector.shape_cast %85 : vector<1xf32> to vector<1x1x1xf32>
    %87 = vector.extract %86[0, 0, 0] : f32 from vector<1x1x1xf32>
    %88 = vector.broadcast %87 : f32 to vector<1x8x128xf32>
    %c0_28 = arith.constant 0 : index
    %c0_29 = arith.constant 0 : index
    %c0_30 = arith.constant 0 : index
    %89 = vector.load %arg4[%c0_28, %c0_29, %c0_30] : memref<1x8x128xf32, #tpu.memory_space<vmem>>, vector<1x8x128xf32>
    tpu.vector_store %arg4[%c0_28, %c0_29, %c0_30], %88 {strides = array<i32>} : memref<1x8x128xf32, #tpu.memory_space<vmem>>, vector<1x8x128xf32>,
    return
  }
  func.func @transform_0(%arg0: i32) -> (i32, i32) {
    %c0_i32 = arith.constant 0 : i32
    %c0_i32_0 = arith.constant 0 : i32
    %c0_i32_1 = arith.constant 0 : i32
    return %c0_i32, %c0_i32_0 : i32, i32
  }
  func.func @transform_1(%arg0: i32) -> (i32, i32) {
    %c0_i32 = arith.constant 0 : i32
    %c0_i32_0 = arith.constant 0 : i32
    return %arg0, %c0_i32 : i32, i32
  }
  func.func @transform_2(%arg0: i32) -> (i32, i32) {
    %c0_i32 = arith.constant 0 : i32
    %c0_i32_0 = arith.constant 0 : i32
    return %arg0, %c0_i32 : i32, i32
  }
  func.func @transform_3(%arg0: i32) -> (i32, i32, i32) {
    %c0_i32 = arith.constant 0 : i32
    %c0_i32_0 = arith.constant 0 : i32
    %c0_i32_1 = arith.constant 0 : i32
    return %arg0, %c0_i32, %c0_i32_0 : i32, i32, i32
  }
}

</mosaic_0001>

<llo_original>
// kernel: tpu_custom_call.1
$region0: #{tpu_custom_call.1}
  #allocation0 [shape = 'u32[]', space=smem, size = 0x4, offset = 0x4, fixed_abs, tag = 'smem constant byte address 0x4 - core index']
  #allocation1 [shape = 'u32[72,128]{1,0:T(1,128)}', space=vmem, size = 0x9000, scoped, tag = 'internal scratch']
  #allocation2 [shape = 'f32[1,1]{1,0:T(1,128)S(6)}', space=smem, size = 0x200, scoped, tag = 'scoped memory for tpu_custom_call.1']
  %s0 = inlined_call_operand.<no memory space> [shape: f32[1,1], index: 0, kind: input, shape index: {}]
  %s1 = inlined_call_operand.hbm [shape: f32[8,128], index: 1, kind: input, shape index: {}]
  %s2 = inlined_call_operand.hbm [shape: f32[8,128], index: 2, kind: input, shape index: {}]
  %s3 = inlined_call_operand.hbm [shape: f32[1,8,128], index: 3, kind: output, shape index: {}]
  %s4 = sld [smem:[#allocation0]]
  $region30: #{tpu_custom_call.1} parent=0
    _
  %s6 = ssub.s32 1, %s4
  %s7 = scalar_select 0, %s6, %s4
  %8 = sst [smem:[#allocation2]] %s0
  $region1: #{tpu_custom_call.1} parent=0
    #allocation3 [shape = 'u8[4096]{0}', space=vmem, size = 0x1000, scoped, tag = 'input window, operand 1, single buffered']
    #allocation4 [shape = 's32[1]{0}', space=sflag, size = 0x4, scoped, tag = 'scoped memory for tpu_custom_call.1']
    #allocation5 [shape = 's32[1]{0}', space=sflag, size = 0x4, scoped, tag = 'scoped memory for tpu_custom_call.1']
    #allocation6 [shape = 'u8[4096]{0}', space=vmem, size = 0x1000, scoped, tag = 'input window, operand 2, single buffered']
    #allocation7 [shape = 's32[1]{0}', space=sflag, size = 0x4, scoped, tag = 'scoped memory for tpu_custom_call.1']
    #allocation8 [shape = 'u8[4096]{0}', space=vmem, size = 0x1000, scoped, tag = 'output window, operand 0, single buffered']
    %9 = vsyncpa [#allocation4], 0
    %10 = vsyncpa [#allocation7], 0
    %11 = vsyncpa [#allocation5], 0
    // Predicated region
    $region2: #{tpu_custom_call.1} parent=1 // pred_check
      _
    $region3: #{tpu_custom_call.1} parent=1 // pred_check_branch
      %13 = sbr.rel (0) target = $region5
    $region4: #{tpu_custom_call.1} parent=1 // pred_region
      _
    $region5: #{tpu_custom_call.1} parent=1 // pred_fallthru
      _
    // Predicated region
    $region6: #{tpu_custom_call.1} parent=1 // pred_check
      _
    $region7: #{tpu_custom_call.1} parent=1 // pred_check_branch
      %15 = sbr.rel (0) target = $region9
    $region8: #{tpu_custom_call.1} parent=1 // pred_region
      %17 = vsyncadd [#allocation4], 0
      %s19 = sshll.u32 %s1, 4
      %s20 = int_to_ptr.hbm [resolvable:$true] %s19
      %s21 = sshll.u32 [#allocation3], 4
      %s22 = int_to_ptr.vmem [resolvable:$true] %s21
      %24 = dma.hbm_to_vmem [thread:$0]  %s20, 128, %s22, [#allocation4]
    $region9: #{tpu_custom_call.1} parent=1 // pred_fallthru
      _
    // Predicated region
    $region10: #{tpu_custom_call.1} parent=1 // pred_check
      _
    $region11: #{tpu_custom_call.1} parent=1 // pred_check_branch
      %26 = sbr.rel (0) target = $region13
    $region12: #{tpu_custom_call.1} parent=1 // pred_region
      %28 = vsyncadd [#allocation7], 0
      %s30 = sshll.u32 %s2, 4
      %s31 = int_to_ptr.hbm [resolvable:$true] %s30
      %s32 = sshll.u32 [#allocation6], 4
      %s33 = int_to_ptr.vmem [resolvable:$true] %s32
      %35 = dma.hbm_to_vmem [thread:$0]  %s31, 128, %s33, [#allocation7]
    $region13: #{tpu_custom_call.1} parent=1 // pred_fallthru
      _
    // Predicated region
    $region14: #{tpu_custom_call.1} parent=1 // pred_check
      _
    $region15: #{tpu_custom_call.1} parent=1 // pred_check_branch
      %37 = sbr.rel (0) target = $region17
    $region16: #{tpu_custom_call.1} parent=1 // pred_region
      %39 = dma.done [#allocation4], 128
    $region17: #{tpu_custom_call.1} parent=1 // pred_fallthru
      _
    // Predicated region
    $region18: #{tpu_custom_call.1} parent=1 // pred_check
      _
    $region19: #{tpu_custom_call.1} parent=1 // pred_check_branch
      %41 = sbr.rel (0) target = $region21
    $region20: #{tpu_custom_call.1} parent=1 // pred_region
      %43 = dma.done [#allocation7], 128
    $region21: #{tpu_custom_call.1} parent=1 // pred_fallthru
      _
    %s44 = sld [smem:[#allocation2]]
    %v45 = vld [vmem:[#allocation3] sm:$0xff]
    %v46 = vld [vmem:[#allocation6] sm:$0xff]
    %47 = vadd.xlane.f32.xlu0 %v45
    %v48 = vpop.xlane.xlu0 %47
    %v49 = vmul.f32 %v45, %v45
    %50 = vadd.xlane.f32.xlu0 %v49
    %v51 = vpop.xlane.xlu0 %50
    %v52 = vrcp.pop 128.0
    %v53 = vmul.f32 128.0, %v52
    %v54 = vsub.f32 1.0, %v53
    %v55 = vmul.f32 %v52, %v54
    %v56 = vadd.f32 %v52, %v55
    %vm57 = vweird.f32 %v52
    %v58 = vsel %vm57, %v52, %v56
    %v59 = vmul.f32 %v48, %v58
    %v60 = vmul.f32 %v59, 128.0
    %v61 = vmul.f32 %v60, %v59
    %v62 = vsub.f32 %v51, %v61
    %v63 = vrcp.pop 127.0
    %v64 = vmul.f32 127.0, %v63
    %v65 = vsub.f32 1.0, %v64
    %v66 = vmul.f32 %v63, %v65
    %v67 = vadd.f32 %v63, %v66
    %vm68 = vweird.f32 %v63
    %v69 = vsel %vm68, %v63, %v67
    %v70 = vmul.f32 %v62, %v69
    %v71 = vmax.f32 %v70, 0.0
    %v72 = vrsqrt.pop %v71
    %v73 = vmul.f32 %v72, %v71
    %v74 = vmul.f32 %v73, %v72
    %v75 = vmul.f32 0.5, %v74
    %v76 = vsub.f32 1.5, %v75
    %v77 = vmul.f32 %v72, %v76
    %v78 = vmul.f32 %v71, %v77
    %vm79 = vcmp.eq.f32.partialorder %v71, inf
    %v80 = vsel %vm79, %v71, %v78
    %vm81 = vcmp.eq.f32.partialorder %v71, 0.0
    %v82 = vand.u32 %v71, 2147483648
    %v83 = vsel %vm81, %v82, %v80
    %v84 = vadd.f32 %v83, 1e-07
    %v85 = vstv %s44
    %v86 = vrcp.pop %v84
    %v87 = vmul.f32 %v84, %v86
    %v88 = vsub.f32 1.0, %v87
    %v89 = vmul.f32 %v86, %v88
    %v90 = vadd.f32 %v86, %v89
    %vm91 = vweird.f32 %v84
    %vm92 = vweird.f32 %v86
    %vm93 = vmor %vm91, %vm92
    %v94 = vsel %vm93, %v86, %v90
    %v95 = vand.u32 2147483647, %v84
    %vm96 = vcmp.eq.f32.partialorder %v95, 8.507059e+37
    %v97 = vand.u32 %v84, 2147483648
    %v98 = vor.u32 1.1754944e-38, %v97
    %v99 = vsel %vm96, %v98, %v94
    %v100 = vmul.f32 %v85, %v99
    %v101 = vmul.f32 %v45, %v100
    %102 = vadd.xlane.f32.xlu0 %v46
    %v103 = vpop.xlane.xlu0 %102
    %v104 = vmul.f32 %v46, %v46
    %105 = vadd.xlane.f32.xlu0 %v104
    %v106 = vpop.xlane.xlu0 %105
    %v107 = vmul.f32 %v103, %v58
    %v108 = vmul.f32 %v107, 128.0
    %v109 = vmul.f32 %v108, %v107
    %v110 = vsub.f32 %v106, %v109
    %v111 = vmul.f32 %v110, %v69
    %v112 = vmax.f32 %v111, 0.0
    %v113 = vrsqrt.pop %v112
    %v114 = vmul.f32 %v113, %v112
    %v115 = vmul.f32 %v114, %v113
    %v116 = vmul.f32 0.5, %v115
    %v117 = vsub.f32 1.5, %v116
    %v118 = vmul.f32 %v113, %v117
    %v119 = vmul.f32 %v112, %v118
    %vm120 = vcmp.eq.f32.partialorder %v112, inf
    %v121 = vsel %vm120, %v112, %v119
    %vm122 = vcmp.eq.f32.partialorder %v112, 0.0
    %v123 = vand.u32 %v112, 2147483648
    %v124 = vsel %vm122, %v123, %v121
    %v125 = vadd.f32 %v124, 1e-07
    %v126 = vrcp.pop %v125
    %v127 = vmul.f32 %v125, %v126
    %v128 = vsub.f32 1.0, %v127
    %v129 = vmul.f32 %v126, %v128
    %v130 = vadd.f32 %v126, %v129
    %vm131 = vweird.f32 %v125
    %vm132 = vweird.f32 %v126
    %vm133 = vmor %vm131, %vm132
    %v134 = vsel %vm133, %v126, %v130
    %v135 = vand.u32 2147483647, %v125
    %vm136 = vcmp.eq.f32.partialorder %v135, 8.507059e+37
    %v137 = vand.u32 %v125, 2147483648
    %v138 = vor.u32 1.1754944e-38, %v137
    %v139 = vsel %vm136, %v138, %v134
    %v140 = vmul.f32 %v85, %v139
    %v141 = vmul.f32 %v46, %v140
    %142 = vmax.xlane.f32.xlu0 %v101
    %v143 = vpop.xlane.xlu0 %142
    %v144 = vsub.f32 %v101, %v143
    %v145 = vmul.f32 %v144, 1.442695
    %v146 = vpow.pop %v145
    %147 = vadd.xlane.f32.xlu0 %v146
    %v148 = vpop.xlane.xlu0 %147
    %v149 = vlog2.pop %v148
    %v150 = vmul.f32 %v149, 0.6931472
    %v151 = vsub.f32 %v144, %v150
    %152 = vmax.xlane.f32.xlu0 %v141
    %v153 = vpop.xlane.xlu0 %152
    %v154 = vsub.f32 %v141, %v153
    %v155 = vmul.f32 %v154, 1.442695
    %v156 = vpow.pop %v155
    %157 = vadd.xlane.f32.xlu0 %v156
    %v158 = vpop.xlane.xlu0 %157
    %v159 = vlog2.pop %v158
    %v160 = vmul.f32 %v159, 0.6931472
    %v161 = vsub.f32 %v154, %v160
    %v162 = vrcp.pop %v158
    %v163 = vmul.f32 %v158, %v162
    %v164 = vsub.f32 1.0, %v163
    %v165 = vmul.f32 %v162, %v164
    %v166 = vadd.f32 %v162, %v165
    %vm167 = vweird.f32 %v158
    %vm168 = vweird.f32 %v162
    %vm169 = vmor %vm167, %vm168
    %v170 = vsel %vm169, %v162, %v166
    %v171 = vand.u32 2147483647, %v158
    %vm172 = vcmp.eq.f32.partialorder %v171, 8.507059e+37
    %v173 = vand.u32 %v158, 2147483648
    %v174 = vor.u32 1.1754944e-38, %v173
    %v175 = vsel %vm172, %v174, %v170
    %v176 = vmul.f32 %v156, %v175
    %v177 = vsub.f32 %v161, %v151
    %v178 = vmul.f32 %v176, %v177
    %179 = vadd.xlane.f32.xlu0 %v178
    %v180 = vpop.xlane.xlu0 %179
    %s181 = smul.u32 0, 8
    %v182 = vlaneseq
    %v183 = vshrl.u32 %v182, 7
    %v184 = vstv %s181
    %v185 = vadd.s32 %v184, %v183
    %vm186 = vcmp.lt.s32.totalorder %v185, 8
    %v187 = vsel %vm186, %v180, 0.0
    %vm188 = vcmask 7168
    %v189 = vsel %vm188, %v187, 0.0
    %190 = vadd.xlane.f32.xlu0 %v189
    %v191 = vpop.xlane.xlu0 %190
    %v192 = vrot.slane %v191, 4
    %v193 = vadd.f32 %v191, %v192
    %v194 = vrot.slane %v193, 2
    %v195 = vadd.f32 %v193, %v194
    %v196 = vrot.slane %v195, 1
    %v197 = vadd.f32 %v195, %v196
    %s198 = vtos %v197
    %v199 = vstv %s198
    %200 = vst [vmem:[#allocation8] sm:$0xff] %v199
    // Predicated region
    $region22: #{tpu_custom_call.1} parent=1 // pred_check
      _
    $region23: #{tpu_custom_call.1} parent=1 // pred_check_branch
      %202 = sbr.rel (0) target = $region25
    $region24: #{tpu_custom_call.1} parent=1 // pred_region
      %204 = vsyncadd [#allocation5], 0
      %s206 = sshll.u32 [#allocation8], 4
      %s207 = int_to_ptr.vmem [resolvable:$true] %s206
      %s208 = sshll.u32 %s3, 4
      %s209 = int_to_ptr.hbm [resolvable:$true] %s208
      %211 = dma.vmem_to_hbm [thread:$0]  %s207, 128, %s209, [#allocation5]
    $region25: #{tpu_custom_call.1} parent=1 // pred_fallthru
      _
    // Predicated region
    $region26: #{tpu_custom_call.1} parent=1 // pred_check
      _
    $region27: #{tpu_custom_call.1} parent=1 // pred_check_branch
      %213 = sbr.rel (0) target = $region29
    $region28: #{tpu_custom_call.1} parent=1 // pred_region
      %215 = dma.done [#allocation5], 128
    $region29: #{tpu_custom_call.1} parent=1 // pred_fallthru
      _
    %216 = vsyncpa [#allocation4], 1
    %217 = vsyncpa [#allocation7], 1
    %218 = vsyncpa [#allocation5], 1

</llo_original>
